<compile_context>
chip_gen: v5e
topology: v5e:2x2
jax: 0.10.0
libtpu: 0.0.40
codegen_flags: <defaults>
</compile_context>

<pallas_src>
import jax
import jax.numpy as jnp
from jax import lax
from jax.experimental import pallas as pl
from jax.experimental.pallas import tpu as pltpu

H = W = 16            # spatial size
CIN = 4               # inplanes
COUT = 8              # planes
KS = 3                # depthwise kernel size
PAD = 1               # fixed_padding for kernel_size=3, dilation=1
CPAD = 128 // W       # pad CIN -> 8 channels so W*CPAD == 128 lanes
LIN = W * CPAD        # 128 lanes for the input stage
LOUT = W * COUT       # 128 lanes for every output stage
NTAP_PAD = 16         # depthwise tap table padded 9 -> 16 rows (2 vregs)

MIN_ROWS_PER_STEP = 256    # never split into steps smaller than this
MAX_ROWS_PER_BLOCK = 512   # row-tile cap for large batches (multiple of H)


# ----------------------------- kernel ---------------------------------------

def _dwconv_lane_dense(y, dw, rows, lanes, mask_top, mask_bot):
    """Depthwise 3x3, stride 1, zero padding, on a (rows, W*c) lane-dense slab.

    Lane index = w*c + ch.  Spatial shifts use pltpu.roll (XLU).  The
    w-direction boundary is pre-folded into `dw` (zeroed weight lanes per
    tap); the h-direction boundary is one mask multiply on the kh=0 / kh=2
    partial sums.  dw: (NTAP_PAD, lanes), tap (kh,kw) in row kh*KS+kw.
    """
    c = lanes // W
    acc = jnp.zeros((rows, lanes), jnp.float32)
    for kh in range(KS):
        dh = kh - PAD
        y_h = y if dh == 0 else pltpu.roll(y, (-dh) % rows, 0)
        part = jnp.zeros((rows, lanes), jnp.float32)
        for kw in range(KS):
            dw_off = kw - PAD
            y_hw = y_h if dw_off == 0 else pltpu.roll(y_h, (-dw_off * c) % lanes, 1)
            t = kh * KS + kw
            part = part + y_hw * dw[t:t + 1, :]
        if dh == -1:
            part = part * mask_top
        elif dh == 1:
            part = part * mask_bot
        acc = acc + part
    return acc


def block_kernel(x_ref, dw1_ref, pw1_ref, dw2_ref, w2_ref, b_ref, out_ref):
    rows = x_ref.shape[0]
    x = x_ref[...]                       # (rows, 128) f32
    dw1 = dw1_ref[...]                   # (16, 128) f32 (hoisted tap table)
    dw2 = dw2_ref[...]                   # (16, 128) f32
    b = b_ref[...]                       # (2, 128)  f32

    # h-boundary masks, computed once and shared by both depthwise convs.
    # h = row % H handles multiple images stacked along the row axis as long
    # as the block row count is a multiple of H (guaranteed by the wrapper).
    h = lax.broadcasted_iota(jnp.int32, (rows, LIN), 0) % H
    mask_top = (h >= 1).astype(jnp.float32)        # valid rows for dh = -1
    mask_bot = (h <= H - 2).astype(jnp.float32)    # valid rows for dh = +1

    # rep[0..2]: ReLU -> SepConv(CIN->COUT) -> BN   (BNs folded into pw1/bias)
    y = jnp.maximum(x, 0.0)
    y = _dwconv_lane_dense(y, dw1, rows, LIN, mask_top, mask_bot)
    y = jnp.dot(y.astype(jnp.bfloat16), pw1_ref[...],
                preferred_element_type=jnp.float32) + b[0:1, :]

    # rep[3..5]: ReLU -> SepConv(COUT->COUT) -> BN  (BNs folded into w2/bias)
    y = jnp.maximum(y, 0.0)
    y = _dwconv_lane_dense(y, dw2, rows, LOUT, mask_top, mask_bot)

    # Final pointwise 1x1 + skip 1x1 (+ both BNs) fused into ONE K=256 matmul.
    ycat = jnp.concatenate(
        [y.astype(jnp.bfloat16), x.astype(jnp.bfloat16)], axis=-1)  # (rows,256)
    out = jnp.dot(ycat, w2_ref[...], preferred_element_type=jnp.float32)
    out_ref[...] = out + b[1:2, :]


# --------------------- wrapper-side weight preparation -----------------------

def _expand_dw(dw, c):
    """(KS,KS,c) depthwise weights -> (NTAP_PAD, W*c) lane-tiled tap table
    with the w-direction zero-padding boundary folded in (zeroed lanes)."""
    lanes = W * c
    w_idx = jnp.arange(lanes) // c
    taps = []
    for kh in range(KS):
        for kw in range(KS):
            wt = jnp.tile(dw[kh, kw], W)          # lane w*c + ch -> dw[kh,kw,ch]
            if kw - PAD == 1:
                wt = jnp.where(w_idx < W - 1, wt, 0.0)
            elif kw - PAD == -1:
                wt = jnp.where(w_idx >= 1, wt, 0.0)
            taps.append(wt)
    t = jnp.stack(taps)                            # (9, lanes)
    return jnp.pad(t, ((0, NTAP_PAD - KS * KS), (0, 0))).astype(jnp.float32)


def _block_diag(m):
    """(cin, cout) 1x1-conv weights -> (W*cin, W*cout) block-diagonal matrix
    acting on the lane-interleaved (w-major, channel-minor) layout."""
    cin, cout = m.shape
    eye = jnp.eye(W, dtype=jnp.float32)
    return jnp.einsum('ij,cd->icjd', eye, m).reshape(W * cin, W * cout)


def _fold_params(params):
    """Fold inference-mode BNs into conv weights / two biases and expand to
    the lane-dense layouts used by the kernel."""
    (dw1, pw1, s1a, b1a, s1b, b1b,
     dw2, pw2, s2a, b2a, s2b, b2b,
     wsk, ssk, bsk) = [jnp.asarray(p, jnp.float32) for p in params]
    (s1a, b1a, s1b, b1b, s2a, b2a, s2b, b2b, ssk, bsk) = (
        v.reshape(-1) for v in (s1a, b1a, s1b, b1b, s2a, b2a, s2b, b2b, ssk, bsk))

    # ((dw1(x)*s1a + b1a) @ pw1) * s1b + b1b  ==  dw1(x) @ pw1_eff + bias1
    pw1_eff = (s1a[:, None] * pw1) * s1b[None, :]            # (CIN, COUT)
    bias1 = (b1a @ pw1) * s1b + b1b                          # (COUT,)
    pw2_eff = (s2a[:, None] * pw2) * s2b[None, :]            # (COUT, COUT)
    bias2 = (b2a @ pw2) * s2b + b2b                          # (COUT,)
    wsk_eff = wsk * ssk[None, :]                             # (CIN, COUT)
    bias_f = bias2 + bsk                                     # merged final bias

    # zero-pad CIN -> CPAD so every in-kernel tensor is exactly 128 lanes wide
    dw1_p = jnp.pad(dw1, ((0, 0), (0, 0), (0, CPAD - CIN)))
    pw1_p = jnp.pad(pw1_eff, ((0, CPAD - CIN), (0, 0)))
    wsk_p = jnp.pad(wsk_eff, ((0, CPAD - CIN), (0, 0)))

    dw1_t = _expand_dw(dw1_p, CPAD)                          # (16, 128) f32
    dw2_t = _expand_dw(dw2, COUT)                            # (16, 128) f32
    pw1_bd = _block_diag(pw1_p).astype(jnp.bfloat16)         # (128, 128) bf16
    # Fused final weight: rows 0..127 act on y2, rows 128..255 on the input x.
    w2sk = jnp.concatenate([_block_diag(pw2_eff),
                            _block_diag(wsk_p)], axis=0).astype(jnp.bfloat16)
    biases = jnp.stack([jnp.tile(bias1, W),
                        jnp.tile(bias_f, W)]).astype(jnp.float32)   # (2, 128)
    return dw1_t, pw1_bd, dw2_t, w2sk, biases


def xception_block(x_nchw, params):
    """x_nchw: (N, CIN, H, W) float32 -> (N, COUT, H, W) float32."""
    n = x_nchw.shape[0]
    x = jnp.transpose(x_nchw, (0, 2, 3, 1)).astype(jnp.float32)   # NHWC
    x = jnp.pad(x, ((0, 0), (0, 0), (0, 0), (0, CPAD - CIN)))     # channel pad
    x2d = x.reshape(n * H, LIN)                                   # (N*H, 128)

    kparams = _fold_params(params)
    rows_total = n * H

    # Row tiling: one grid step for tiny batches (per-step overhead dominates),
    # a 2-way "parallel" split only when each step carries >= MIN_ROWS_PER_STEP
    # rows, and bounded row blocks for large batches (VMEM + DMA pipelining).
    # Block row counts are always a multiple of H, so images never straddle a
    # block boundary (required by the roll-based h shifts).
    if rows_total <= MAX_ROWS_PER_BLOCK:
        if rows_total >= 2 * MIN_ROWS_PER_STEP and n % 2 == 0:
            block_rows = rows_total // 2
        else:
            block_rows = rows_total
    else:
        block_rows = (MAX_ROWS_PER_BLOCK // H) * H
    n_steps = pl.cdiv(rows_total, block_rows)

    # NOTE: the five parameter inputs have constant index_maps, so Pallas does
    # not re-DMA them across grid steps; pl.Buffered(1) would additionally drop
    # their double buffers (~130 KiB) but the saving is negligible here.
    def param_spec(p):
        return pl.BlockSpec(p.shape, lambda i, _nd=p.ndim: (0,) * _nd)

    in_specs = [pl.BlockSpec((block_rows, LIN), lambda i: (i, 0))]
    in_specs += [param_spec(p) for p in kparams]

    flops = (2 * rows_total * LIN * LOUT               # stage-1 pointwise matmul
             + 2 * rows_total * (LIN + LOUT) * LOUT    # fused K=256 final matmul
             + 2 * 2 * KS * KS * rows_total * LIN)     # two depthwise convs
    bytes_accessed = (4 * x2d.size + 4 * rows_total * LOUT
                      + sum(int(p.size) * p.dtype.itemsize for p in kparams))

    out2d = pl.pallas_call(
        block_kernel,
        out_shape=jax.ShapeDtypeStruct((rows_total, LOUT), jnp.float32),
        grid_spec=pltpu.PrefetchScalarGridSpec(
            num_scalar_prefetch=0,
            grid=(n_steps,),
            in_specs=in_specs,
            out_specs=pl.BlockSpec((block_rows, LOUT), lambda i: (i, 0))),
        compiler_params=pltpu.CompilerParams(
            dimension_semantics=("parallel",)),
        cost_estimate=pl.CostEstimate(flops=flops, transcendentals=0,
                                      bytes_accessed=bytes_accessed),
    )(x2d, *kparams)

    out = out2d.reshape(n, H, W, COUT)
    return jnp.transpose(out, (0, 3, 1, 2))                       # back to NCHW


# ----------------------------- test harness ----------------------------------

def make_params(key):
    """Deterministic synthetic parameters. BN stats pre-folded to scale/bias."""
    ks = jax.random.split(key, 10)

    def bn_fold(c, k):
        k1, k2, k3, k4 = jax.random.split(k, 4)
        gamma = 1.0 + 0.1 * jax.random.normal(k1, (c,))
        beta = 0.1 * jax.random.normal(k2, (c,))
        mean = 0.1 * jax.random.normal(k3, (c,))
        var = jnp.abs(jax.random.normal(k4, (c,))) + 0.5
        scale = gamma / jnp.sqrt(var + 1e-5)
        bias = beta - mean * scale
        return (scale.reshape(1, 1, c).astype(jnp.float32),
                bias.reshape(1, 1, c).astype(jnp.float32))

    dw1 = (0.2 * jax.random.normal(ks[0], (KS, KS, CIN))).astype(jnp.float32)
    pw1 = (0.2 * jax.random.normal(ks[1], (CIN, COUT))).astype(jnp.float32)
    s1a, b1a = bn_fold(CIN, ks[2])     # BN inside SepConv1 (on CIN channels)
    s1b, b1b = bn_fold(COUT, ks[3])    # BN after SepConv1
    dw2 = (0.2 * jax.random.normal(ks[4], (KS, KS, COUT))).astype(jnp.float32)
    pw2 = (0.2 * jax.random.normal(ks[5], (COUT, COUT))).astype(jnp.float32)
    s2a, b2a = bn_fold(COUT, ks[6])    # BN inside SepConv2
    s2b, b2b = bn_fold(COUT, ks[7])    # BN after SepConv2
    wsk = (0.2 * jax.random.normal(ks[8], (CIN, COUT))).astype(jnp.float32)
    ssk, bsk = bn_fold(COUT, ks[9])    # skip BN
    return [dw1, pw1, s1a, b1a, s1b, b1b,
            dw2, pw2, s2a, b2a, s2b, b2b,
            wsk, ssk, bsk]


def reference(x_nchw, params):
    """Pure-jnp NHWC reference of the same Block forward (for validation)."""
    (dw1, pw1, s1a, b1a, s1b, b1b,
     dw2, pw2, s2a, b2a, s2b, b2b,
     wsk, ssk, bsk) = params
    x = jnp.transpose(x_nchw, (0, 2, 3, 1)).astype(jnp.float32)

    def dwconv(y, wdw):
        yp = jnp.pad(y, ((0, 0), (PAD, PAD), (PAD, PAD), (0, 0)))
        acc = jnp.zeros_like(y)
        for kh in range(KS):
            for kw in range(KS):
                acc = acc + yp[:, kh:kh + H, kw:kw + W, :] * wdw[kh, kw, :]
        return acc

    y = jnp.maximum(x, 0.0)
    y = dwconv(y, dw1) * s1a + b1a
    y = jnp.einsum('nhwc,cd->nhwd', y, pw1) * s1b + b1b
    y = jnp.maximum(y, 0.0)
    y = dwconv(y, dw2) * s2a + b2a
    y = jnp.einsum('nhwc,cd->nhwd', y, pw2) * s2b + b2b
    skip = jnp.einsum('nhwc,cd->nhwd', x, wsk) * ssk + bsk
    return jnp.transpose(y + skip, (0, 3, 1, 2))


if __name__ == "__main__":
    key = jax.random.PRNGKey(0)
    kx, kp = jax.random.split(key)
    x = jax.random.normal(kx, (2, CIN, H, W), dtype=jnp.float32)   # NCHW input
    params = make_params(kp)

    fwd = jax.jit(xception_block)
    out = jax.block_until_ready(fwd(x, params))
    ref = reference(x, params)
    assert out.shape == (2, COUT, H, W), out.shape
    assert jnp.allclose(out, ref, atol=3e-2, rtol=3e-2), \
        float(jnp.max(jnp.abs(out - ref)))

    print("KERNEL_OK")
</pallas_src>

<mosaic_0001>
module attributes {stable_mosaic.version = 11 : i64} {
  func.func @block_kernel(%arg0: i32, %arg1: memref<32x128xf32, #tpu.memory_space<vmem>>, %arg2: memref<16x128xf32, #tpu.memory_space<vmem>>, %arg3: memref<128x128xbf16, #tpu.memory_space<vmem>>, %arg4: memref<16x128xf32, #tpu.memory_space<vmem>>, %arg5: memref<256x128xbf16, #tpu.memory_space<vmem>>, %arg6: memref<2x128xf32, #tpu.memory_space<vmem>>, %arg7: memref<32x128xf32, #tpu.memory_space<vmem>>) attributes {dimension_semantics = [#tpu.dimension_semantics<parallel>], iteration_bounds = array<i64: 1>, scalar_prefetch = 0 : i64, scratch_operands = 0 : i64, tpu.core_type = #tpu.core_type<tc>, window_params = [{transform_indices = @transform_0, window_bounds = array<i64: 32, 128>}, {pipeline_mode = #tpu.pipeline_mode<synchronous>, transform_indices = @transform_1, window_bounds = array<i64: 16, 128>}, {pipeline_mode = #tpu.pipeline_mode<synchronous>, transform_indices = @transform_2, window_bounds = array<i64: 128, 128>}, {pipeline_mode = #tpu.pipeline_mode<synchronous>, transform_indices = @transform_3, window_bounds = array<i64: 16, 128>}, {pipeline_mode = #tpu.pipeline_mode<synchronous>, transform_indices = @transform_4, window_bounds = array<i64: 256, 128>}, {pipeline_mode = #tpu.pipeline_mode<synchronous>, transform_indices = @transform_5, window_bounds = array<i64: 2, 128>}, {transform_indices = @transform_6, window_bounds = array<i64: 32, 128>}]} {
    %c0 = arith.constant 0 : index
    %c0_0 = arith.constant 0 : index
    %0 = vector.load %arg1[%c0, %c0_0] : memref<32x128xf32, #tpu.memory_space<vmem>>, vector<32x128xf32>
    %c0_1 = arith.constant 0 : index
    %c0_2 = arith.constant 0 : index
    %1 = vector.load %arg2[%c0_1, %c0_2] : memref<16x128xf32, #tpu.memory_space<vmem>>, vector<16x128xf32>
    %c0_3 = arith.constant 0 : index
    %c0_4 = arith.constant 0 : index
    %2 = vector.load %arg4[%c0_3, %c0_4] : memref<16x128xf32, #tpu.memory_space<vmem>>, vector<16x128xf32>
    %c0_5 = arith.constant 0 : index
    %c0_6 = arith.constant 0 : index
    %3 = vector.load %arg6[%c0_5, %c0_6] : memref<2x128xf32, #tpu.memory_space<vmem>>, vector<2x128xf32>
    %4 = tpu.iota {dimensions = array<i32: 0>} : vector<32x128xi32>
    %c16_i32 = arith.constant 16 : i32
    %c0_i32 = arith.constant 0 : i32
    %5 = arith.cmpi eq, %c16_i32, %c0_i32 : i32
    %c1_i32 = arith.constant 1 : i32
    %6 = arith.select %5, %c1_i32, %c16_i32 : i32
    %7 = vector.broadcast %6 : i32 to vector<32x128xi32>
    %8 = arith.remsi %4, %7 : vector<32x128xi32>
    %c0_i32_7 = arith.constant 0 : i32
    %9 = vector.broadcast %c0_i32_7 : i32 to vector<32x128xi32>
    %10 = arith.cmpi ne, %8, %9 : vector<32x128xi32>
    %c0_i32_8 = arith.constant 0 : i32
    %11 = vector.broadcast %c0_i32_8 : i32 to vector<32x128xi32>
    %12 = arith.cmpi slt, %8, %11 : vector<32x128xi32>
    %c0_i32_9 = arith.constant 0 : i32
    %13 = arith.cmpi slt, %6, %c0_i32_9 : i32
    %14 = vector.broadcast %13 : i1 to vector<32x128xi1>
    %15 = vector.broadcast %14 : vector<32x128xi1> to vector<32x128xi1>
    %16 = arith.xori %12, %15 : vector<32x128xi1>
    %17 = arith.andi %16, %10 : vector<32x128xi1>
    %18 = vector.broadcast %6 : i32 to vector<32x128xi32>
    %19 = arith.addi %8, %18 : vector<32x128xi32>
    %20 = arith.select %17, %19, %8 : vector<32x128xi1>, vector<32x128xi32>
    %c1_i32_10 = arith.constant 1 : i32
    %21 = vector.broadcast %c1_i32_10 : i32 to vector<32x128xi32>
    %22 = arith.cmpi sge, %20, %21 : vector<32x128xi32>
    %23 = arith.extui %22 : vector<32x128xi1> to vector<32x128xi32>
    %24 = arith.sitofp %23 : vector<32x128xi32> to vector<32x128xf32>
    %c14_i32 = arith.constant 14 : i32
    %25 = vector.broadcast %c14_i32 : i32 to vector<32x128xi32>
    %26 = arith.cmpi sle, %20, %25 : vector<32x128xi32>
    %27 = arith.extui %26 : vector<32x128xi1> to vector<32x128xi32>
    %28 = arith.sitofp %27 : vector<32x128xi32> to vector<32x128xf32>
    %cst = arith.constant 0.000000e+00 : f32
    %29 = vector.broadcast %cst : f32 to vector<32x128xf32>
    %30 = arith.maximumf %0, %29 : vector<32x128xf32>
    %cst_11 = arith.constant 0.000000e+00 : f32
    %31 = vector.broadcast %cst_11 : f32 to vector<32x128xf32>
    %c1_i32_12 = arith.constant 1 : i32
    %32 = tpu.dynamic_rotate %30 by %c1_i32_12 dim 0 : vector<32x128xf32>, i32 -> vector<32x128xf32>
    %cst_13 = arith.constant 0.000000e+00 : f32
    %33 = vector.broadcast %cst_13 : f32 to vector<32x128xf32>
    %c8_i32 = arith.constant 8 : i32
    %34 = tpu.dynamic_rotate %32 by %c8_i32 dim 1 : vector<32x128xf32>, i32 -> vector<32x128xf32>
    %35 = vector.extract_strided_slice %1 {offsets = [0, 0], sizes = [1, 128], strides = [1, 1]} : vector<16x128xf32> to vector<1x128xf32>
    %36 = vector.broadcast %35 : vector<1x128xf32> to vector<32x128xf32>
    %37 = arith.mulf %34, %36 : vector<32x128xf32>
    %38 = arith.addf %33, %37 : vector<32x128xf32>
    %39 = vector.extract_strided_slice %1 {offsets = [1, 0], sizes = [1, 128], strides = [1, 1]} : vector<16x128xf32> to vector<1x128xf32>
    %40 = vector.broadcast %39 : vector<1x128xf32> to vector<32x128xf32>
    %41 = arith.mulf %32, %40 : vector<32x128xf32>
    %42 = arith.addf %38, %41 : vector<32x128xf32>
    %c120_i32 = arith.constant 120 : i32
    %43 = tpu.dynamic_rotate %32 by %c120_i32 dim 1 : vector<32x128xf32>, i32 -> vector<32x128xf32>
    %44 = vector.extract_strided_slice %1 {offsets = [2, 0], sizes = [1, 128], strides = [1, 1]} : vector<16x128xf32> to vector<1x128xf32>
    %45 = vector.broadcast %44 : vector<1x128xf32> to vector<32x128xf32>
    %46 = arith.mulf %43, %45 : vector<32x128xf32>
    %47 = arith.addf %42, %46 : vector<32x128xf32>
    %48 = arith.mulf %47, %24 : vector<32x128xf32>
    %49 = arith.addf %31, %48 : vector<32x128xf32>
    %cst_14 = arith.constant 0.000000e+00 : f32
    %50 = vector.broadcast %cst_14 : f32 to vector<32x128xf32>
    %c8_i32_15 = arith.constant 8 : i32
    %51 = tpu.dynamic_rotate %30 by %c8_i32_15 dim 1 : vector<32x128xf32>, i32 -> vector<32x128xf32>
    %52 = vector.extract_strided_slice %1 {offsets = [3, 0], sizes = [1, 128], strides = [1, 1]} : vector<16x128xf32> to vector<1x128xf32>
    %53 = vector.broadcast %52 : vector<1x128xf32> to vector<32x128xf32>
    %54 = arith.mulf %51, %53 : vector<32x128xf32>
    %55 = arith.addf %50, %54 : vector<32x128xf32>
    %56 = vector.extract_strided_slice %1 {offsets = [4, 0], sizes = [1, 128], strides = [1, 1]} : vector<16x128xf32> to vector<1x128xf32>
    %57 = vector.broadcast %56 : vector<1x128xf32> to vector<32x128xf32>
    %58 = arith.mulf %30, %57 : vector<32x128xf32>
    %59 = arith.addf %55, %58 : vector<32x128xf32>
    %c120_i32_16 = arith.constant 120 : i32
    %60 = tpu.dynamic_rotate %30 by %c120_i32_16 dim 1 : vector<32x128xf32>, i32 -> vector<32x128xf32>
    %61 = vector.extract_strided_slice %1 {offsets = [5, 0], sizes = [1, 128], strides = [1, 1]} : vector<16x128xf32> to vector<1x128xf32>
    %62 = vector.broadcast %61 : vector<1x128xf32> to vector<32x128xf32>
    %63 = arith.mulf %60, %62 : vector<32x128xf32>
    %64 = arith.addf %59, %63 : vector<32x128xf32>
    %65 = arith.addf %49, %64 : vector<32x128xf32>
    %c31_i32 = arith.constant 31 : i32
    %66 = tpu.dynamic_rotate %30 by %c31_i32 dim 0 : vector<32x128xf32>, i32 -> vector<32x128xf32>
    %cst_17 = arith.constant 0.000000e+00 : f32
    %67 = vector.broadcast %cst_17 : f32 to vector<32x128xf32>
    %c8_i32_18 = arith.constant 8 : i32
    %68 = tpu.dynamic_rotate %66 by %c8_i32_18 dim 1 : vector<32x128xf32>, i32 -> vector<32x128xf32>
    %69 = vector.extract_strided_slice %1 {offsets = [6, 0], sizes = [1, 128], strides = [1, 1]} : vector<16x128xf32> to vector<1x128xf32>
    %70 = vector.broadcast %69 : vector<1x128xf32> to vector<32x128xf32>
    %71 = arith.mulf %68, %70 : vector<32x128xf32>
    %72 = arith.addf %67, %71 : vector<32x128xf32>
    %73 = vector.extract_strided_slice %1 {offsets = [7, 0], sizes = [1, 128], strides = [1, 1]} : vector<16x128xf32> to vector<1x128xf32>
    %74 = vector.broadcast %73 : vector<1x128xf32> to vector<32x128xf32>
    %75 = arith.mulf %66, %74 : vector<32x128xf32>
    %76 = arith.addf %72, %75 : vector<32x128xf32>
    %c120_i32_19 = arith.constant 120 : i32
    %77 = tpu.dynamic_rotate %66 by %c120_i32_19 dim 1 : vector<32x128xf32>, i32 -> vector<32x128xf32>
    %78 = vector.extract_strided_slice %1 {offsets = [8, 0], sizes = [1, 128], strides = [1, 1]} : vector<16x128xf32> to vector<1x128xf32>
    %79 = vector.broadcast %78 : vector<1x128xf32> to vector<32x128xf32>
    %80 = arith.mulf %77, %79 : vector<32x128xf32>
    %81 = arith.addf %76, %80 : vector<32x128xf32>
    %82 = arith.mulf %81, %28 : vector<32x128xf32>
    %83 = arith.addf %65, %82 : vector<32x128xf32>
    %84 = arith.truncf %83 : vector<32x128xf32> to vector<32x128xbf16>
    %c0_20 = arith.constant 0 : index
    %c0_21 = arith.constant 0 : index
    %85 = vector.load %arg3[%c0_20, %c0_21] : memref<128x128xbf16, #tpu.memory_space<vmem>>, vector<128x128xbf16>
    %cst_22 = arith.constant dense<0.000000e+00> : vector<32x128xf32>
    %86 = tpu.matmul %84, %85, %cst_22 {dimension_numbers = #tpu.dot_dimension_numbers<[1], [0], [0], [1], [0, 0, 1, 1], [], []>} : vector<32x128xbf16>, vector<128x128xbf16>, vector<32x128xf32> -> vector<32x128xf32>
    %87 = vector.extract_strided_slice %3 {offsets = [0, 0], sizes = [1, 128], strides = [1, 1]} : vector<2x128xf32> to vector<1x128xf32>
    %88 = vector.broadcast %87 : vector<1x128xf32> to vector<32x128xf32>
    %89 = arith.addf %86, %88 : vector<32x128xf32>
    %cst_23 = arith.constant 0.000000e+00 : f32
    %90 = vector.broadcast %cst_23 : f32 to vector<32x128xf32>
    %91 = arith.maximumf %89, %90 : vector<32x128xf32>
    %cst_24 = arith.constant 0.000000e+00 : f32
    %92 = vector.broadcast %cst_24 : f32 to vector<32x128xf32>
    %c1_i32_25 = arith.constant 1 : i32
    %93 = tpu.dynamic_rotate %91 by %c1_i32_25 dim 0 : vector<32x128xf32>, i32 -> vector<32x128xf32>
    %cst_26 = arith.constant 0.000000e+00 : f32
    %94 = vector.broadcast %cst_26 : f32 to vector<32x128xf32>
    %c8_i32_27 = arith.constant 8 : i32
    %95 = tpu.dynamic_rotate %93 by %c8_i32_27 dim 1 : vector<32x128xf32>, i32 -> vector<32x128xf32>
    %96 = vector.extract_strided_slice %2 {offsets = [0, 0], sizes = [1, 128], strides = [1, 1]} : vector<16x128xf32> to vector<1x128xf32>
    %97 = vector.broadcast %96 : vector<1x128xf32> to vector<32x128xf32>
    %98 = arith.mulf %95, %97 : vector<32x128xf32>
    %99 = arith.addf %94, %98 : vector<32x128xf32>
    %100 = vector.extract_strided_slice %2 {offsets = [1, 0], sizes = [1, 128], strides = [1, 1]} : vector<16x128xf32> to vector<1x128xf32>
    %101 = vector.broadcast %100 : vector<1x128xf32> to vector<32x128xf32>
    %102 = arith.mulf %93, %101 : vector<32x128xf32>
    %103 = arith.addf %99, %102 : vector<32x128xf32>
    %c120_i32_28 = arith.constant 120 : i32
    %104 = tpu.dynamic_rotate %93 by %c120_i32_28 dim 1 : vector<32x128xf32>, i32 -> vector<32x128xf32>
    %105 = vector.extract_strided_slice %2 {offsets = [2, 0], sizes = [1, 128], strides = [1, 1]} : vector<16x128xf32> to vector<1x128xf32>
    %106 = vector.broadcast %105 : vector<1x128xf32> to vector<32x128xf32>
    %107 = arith.mulf %104, %106 : vector<32x128xf32>
    %108 = arith.addf %103, %107 : vector<32x128xf32>
    %109 = arith.mulf %108, %24 : vector<32x128xf32>
    %110 = arith.addf %92, %109 : vector<32x128xf32>
    %cst_29 = arith.constant 0.000000e+00 : f32
    %111 = vector.broadcast %cst_29 : f32 to vector<32x128xf32>
    %c8_i32_30 = arith.constant 8 : i32
    %112 = tpu.dynamic_rotate %91 by %c8_i32_30 dim 1 : vector<32x128xf32>, i32 -> vector<32x128xf32>
    %113 = vector.extract_strided_slice %2 {offsets = [3, 0], sizes = [1, 128], strides = [1, 1]} : vector<16x128xf32> to vector<1x128xf32>
    %114 = vector.broadcast %113 : vector<1x128xf32> to vector<32x128xf32>
    %115 = arith.mulf %112, %114 : vector<32x128xf32>
    %116 = arith.addf %111, %115 : vector<32x128xf32>
    %117 = vector.extract_strided_slice %2 {offsets = [4, 0], sizes = [1, 128], strides = [1, 1]} : vector<16x128xf32> to vector<1x128xf32>
    %118 = vector.broadcast %117 : vector<1x128xf32> to vector<32x128xf32>
    %119 = arith.mulf %91, %118 : vector<32x128xf32>
    %120 = arith.addf %116, %119 : vector<32x128xf32>
    %c120_i32_31 = arith.constant 120 : i32
    %121 = tpu.dynamic_rotate %91 by %c120_i32_31 dim 1 : vector<32x128xf32>, i32 -> vector<32x128xf32>
    %122 = vector.extract_strided_slice %2 {offsets = [5, 0], sizes = [1, 128], strides = [1, 1]} : vector<16x128xf32> to vector<1x128xf32>
    %123 = vector.broadcast %122 : vector<1x128xf32> to vector<32x128xf32>
    %124 = arith.mulf %121, %123 : vector<32x128xf32>
    %125 = arith.addf %120, %124 : vector<32x128xf32>
    %126 = arith.addf %110, %125 : vector<32x128xf32>
    %c31_i32_32 = arith.constant 31 : i32
    %127 = tpu.dynamic_rotate %91 by %c31_i32_32 dim 0 : vector<32x128xf32>, i32 -> vector<32x128xf32>
    %cst_33 = arith.constant 0.000000e+00 : f32
    %128 = vector.broadcast %cst_33 : f32 to vector<32x128xf32>
    %c8_i32_34 = arith.constant 8 : i32
    %129 = tpu.dynamic_rotate %127 by %c8_i32_34 dim 1 : vector<32x128xf32>, i32 -> vector<32x128xf32>
    %130 = vector.extract_strided_slice %2 {offsets = [6, 0], sizes = [1, 128], strides = [1, 1]} : vector<16x128xf32> to vector<1x128xf32>
    %131 = vector.broadcast %130 : vector<1x128xf32> to vector<32x128xf32>
    %132 = arith.mulf %129, %131 : vector<32x128xf32>
    %133 = arith.addf %128, %132 : vector<32x128xf32>
    %134 = vector.extract_strided_slice %2 {offsets = [7, 0], sizes = [1, 128], strides = [1, 1]} : vector<16x128xf32> to vector<1x128xf32>
    %135 = vector.broadcast %134 : vector<1x128xf32> to vector<32x128xf32>
    %136 = arith.mulf %127, %135 : vector<32x128xf32>
    %137 = arith.addf %133, %136 : vector<32x128xf32>
    %c120_i32_35 = arith.constant 120 : i32
    %138 = tpu.dynamic_rotate %127 by %c120_i32_35 dim 1 : vector<32x128xf32>, i32 -> vector<32x128xf32>
    %139 = vector.extract_strided_slice %2 {offsets = [8, 0], sizes = [1, 128], strides = [1, 1]} : vector<16x128xf32> to vector<1x128xf32>
    %140 = vector.broadcast %139 : vector<1x128xf32> to vector<32x128xf32>
    %141 = arith.mulf %138, %140 : vector<32x128xf32>
    %142 = arith.addf %137, %141 : vector<32x128xf32>
    %143 = arith.mulf %142, %28 : vector<32x128xf32>
    %144 = arith.addf %126, %143 : vector<32x128xf32>
    %145 = arith.truncf %144 : vector<32x128xf32> to vector<32x128xbf16>
    %146 = arith.truncf %0 : vector<32x128xf32> to vector<32x128xbf16>
    %147 = tpu.concatenate %145, %146 in 1 : vector<32x128xbf16>, vector<32x128xbf16> -> vector<32x256xbf16>
    %c0_36 = arith.constant 0 : index
    %c0_37 = arith.constant 0 : index
    %148 = vector.load %arg5[%c0_36, %c0_37] : memref<256x128xbf16, #tpu.memory_space<vmem>>, vector<256x128xbf16>
    %cst_38 = arith.constant dense<0.000000e+00> : vector<32x128xf32>
    %149 = tpu.matmul %147, %148, %cst_38 {dimension_numbers = #tpu.dot_dimension_numbers<[1], [0], [0], [1], [0, 0, 1, 1], [], []>} : vector<32x256xbf16>, vector<256x128xbf16>, vector<32x128xf32> -> vector<32x128xf32>
    %150 = vector.extract_strided_slice %3 {offsets = [1, 0], sizes = [1, 128], strides = [1, 1]} : vector<2x128xf32> to vector<1x128xf32>
    %151 = vector.broadcast %150 : vector<1x128xf32> to vector<32x128xf32>
    %152 = arith.addf %149, %151 : vector<32x128xf32>
    %c0_39 = arith.constant 0 : index
    %c0_40 = arith.constant 0 : index
    %153 = vector.load %arg7[%c0_39, %c0_40] : memref<32x128xf32, #tpu.memory_space<vmem>>, vector<32x128xf32>
    tpu.vector_store %arg7[%c0_39, %c0_40], %152 {strides = array<i32>} : memref<32x128xf32, #tpu.memory_space<vmem>>, vector<32x128xf32>,
    return
  }
  func.func @transform_0(%arg0: i32) -> (i32, i32) {
    %c0_i32 = arith.constant 0 : i32
    %c0_i32_0 = arith.constant 0 : i32
    return %arg0, %c0_i32 : i32, i32
  }
  func.func @transform_1(%arg0: i32) -> (i32, i32) {
    %c0_i32 = arith.constant 0 : i32
    %c0_i32_0 = arith.constant 0 : i32
    %c0_i32_1 = arith.constant 0 : i32
    return %c0_i32, %c0_i32_0 : i32, i32
  }
  func.func @transform_2(%arg0: i32) -> (i32, i32) {
    %c0_i32 = arith.constant 0 : i32
    %c0_i32_0 = arith.constant 0 : i32
    %c0_i32_1 = arith.constant 0 : i32
    return %c0_i32, %c0_i32_0 : i32, i32
  }
  func.func @transform_3(%arg0: i32) -> (i32, i32) {
    %c0_i32 = arith.constant 0 : i32
    %c0_i32_0 = arith.constant 0 : i32
    %c0_i32_1 = arith.constant 0 : i32
    return %c0_i32, %c0_i32_0 : i32, i32
  }
  func.func @transform_4(%arg0: i32) -> (i32, i32) {
    %c0_i32 = arith.constant 0 : i32
    %c0_i32_0 = arith.constant 0 : i32
    %c0_i32_1 = arith.constant 0 : i32
    return %c0_i32, %c0_i32_0 : i32, i32
  }
  func.func @transform_5(%arg0: i32) -> (i32, i32) {
    %c0_i32 = arith.constant 0 : i32
    %c0_i32_0 = arith.constant 0 : i32
    %c0_i32_1 = arith.constant 0 : i32
    return %c0_i32, %c0_i32_0 : i32, i32
  }
  func.func @transform_6(%arg0: i32) -> (i32, i32) {
    %c0_i32 = arith.constant 0 : i32
    %c0_i32_0 = arith.constant 0 : i32
    return %arg0, %c0_i32 : i32, i32
  }
}

</mosaic_0001>

<llo_original>
// kernel: tile.95
$region0: #{tile.95}
  #allocation0 [shape = 's32[1]{0}', space=sflag, size = 0x4, scoped, tag = 'scoped memory for tile.95']
  %s0 = inlined_call_operand.vmem [shape: f32[8], index: 0, kind: input, shape index: {}]
  %s1 = inlined_call_operand.vmem [shape: f32[16,8], index: 1, kind: output, shape index: {}]
  // Predicated region
  $region2: #{tile.95} parent=0 // pred_check
    _
  $region3: #{tile.95} parent=0 // pred_check_branch
    %3 = sbr.rel (0) target = $region5
  $region4: #{tile.95} parent=0 // pred_region
    _
  $region5: #{tile.95} parent=0 // pred_fallthru
    _
  %v4 = vld [vmem:[%s0] ss:$0 sm:$0xff]
  %5 = vst [vmem:[%s1] sm:$0xff] %v4
  %s6 = scalar_lea.vmem %s1, 8
  %7 = vst [vmem:[%s6] sm:$0xff] %v4

// kernel: xception_block.1
$region0: #{xception_block.1}
  #allocation0 [shape = 'u32[]', space=smem, size = 0x4, offset = 0x4, fixed_abs, tag = 'smem constant byte address 0x4 - core index']
  #allocation1 [shape = 'u32[72,128]{1,0:T(1,128)}', space=vmem, size = 0x9000, scoped, tag = 'internal scratch']
  %s0 = inlined_call_operand.vmem [shape: f32[32,128], index: 0, kind: input, shape index: {}]
  %s1 = inlined_call_operand.vmem [shape: f32[16,128], index: 1, kind: input, shape index: {}]
  %s2 = inlined_call_operand.vmem [shape: bf16[128,128], index: 2, kind: input, shape index: {}]
  %s3 = inlined_call_operand.vmem [shape: f32[16,128], index: 3, kind: input, shape index: {}]
  %s4 = inlined_call_operand.vmem [shape: bf16[256,128], index: 4, kind: input, shape index: {}]
  %s5 = inlined_call_operand.vmem [shape: f32[2,128], index: 5, kind: input, shape index: {}]
  %s6 = inlined_call_operand.vmem [shape: f32[32,128], index: 6, kind: output, shape index: {}]
  %s7 = sld [smem:[#allocation0]]
  $region34: #{xception_block.1} parent=0
    _
  %s9 = ssub.s32 1, %s7
  %s10 = scalar_select 0, %s9, %s7
  // Predicated region
  $region2: #{xception_block.1} parent=0 // pred_check
    _
  $region3: #{xception_block.1} parent=0 // pred_check_branch
    %12 = sbr.rel (0) target = $region5
  $region4: #{xception_block.1} parent=0 // pred_region
    _
  $region5: #{xception_block.1} parent=0 // pred_fallthru
    _
  // Predicated region
  $region6: #{xception_block.1} parent=0 // pred_check
    _
  $region7: #{xception_block.1} parent=0 // pred_check_branch
    %14 = sbr.rel (0) target = $region9
  $region8: #{xception_block.1} parent=0 // pred_region
    _
  $region9: #{xception_block.1} parent=0 // pred_fallthru
    _
  // Predicated region
  $region10: #{xception_block.1} parent=0 // pred_check
    _
  $region11: #{xception_block.1} parent=0 // pred_check_branch
    %16 = sbr.rel (0) target = $region13
  $region12: #{xception_block.1} parent=0 // pred_region
    _
  $region13: #{xception_block.1} parent=0 // pred_fallthru
    _
  // Predicated region
  $region14: #{xception_block.1} parent=0 // pred_check
    _
  $region15: #{xception_block.1} parent=0 // pred_check_branch
    %18 = sbr.rel (0) target = $region17
  $region16: #{xception_block.1} parent=0 // pred_region
    _
  $region17: #{xception_block.1} parent=0 // pred_fallthru
    _
  // Predicated region
  $region18: #{xception_block.1} parent=0 // pred_check
    _
  $region19: #{xception_block.1} parent=0 // pred_check_branch
    %20 = sbr.rel (0) target = $region21
  $region20: #{xception_block.1} parent=0 // pred_region
    _
  $region21: #{xception_block.1} parent=0 // pred_fallthru
    _
  // Predicated region
  $region22: #{xception_block.1} parent=0 // pred_check
    _
  $region23: #{xception_block.1} parent=0 // pred_check_branch
    %22 = sbr.rel (0) target = $region25
  $region24: #{xception_block.1} parent=0 // pred_region
    _
  $region25: #{xception_block.1} parent=0 // pred_fallthru
    _
  %v23 = vld [vmem:[%s0] sm:$0xff]
  %v24 = vld [vmem:[%s0 + $0x8] sm:$0xff]
  %v25 = vld [vmem:[%s0 + $0x10] sm:$0xff]
  %v26 = vld [vmem:[%s0 + $0x18] sm:$0xff]
  %v27 = vld [vmem:[%s1] sm:$0xff]
  %v28 = vld [vmem:[%s1 + $0x8] sm:$0xff]
  %v29 = vld [vmem:[%s3] sm:$0xff]
  %v30 = vld [vmem:[%s3 + $0x8] sm:$0xff]
  %v31 = vld [vmem:[%s5] sm:$0x3]
  %v32 = vlaneseq
  %v33 = vshrl.u32 %v32, 7
  %v34 = vadd.s32 %v33, 8
  %v35 = vadd.s32 %v33, 16
  %v36 = vadd.s32 %v33, 24
  %vm37 = vcmp.lt.s32.totalorder %v33, 0
  %v38 = vsub.s32 0, %v33
  %v39 = vsel %vm37, %v38, %v33
  %v40 = vshrl.u32 %v39, 4
  %v41 = vand.u32 %v39, 15
  %v42 = vsub.s32 0, %v41
  %v43 = vsel %vm37, %v42, %v41
  %vm44 = vcmp.lt.s32.totalorder %v34, 0
  %v45 = vsub.s32 0, %v34
  %v46 = vsel %vm44, %v45, %v34
  %v47 = vshrl.u32 %v46, 4
  %v48 = vand.u32 %v46, 15
  %v49 = vsub.s32 0, %v48
  %v50 = vsel %vm44, %v49, %v48
  %vm51 = vcmp.lt.s32.totalorder %v35, 0
  %v52 = vsub.s32 0, %v35
  %v53 = vsel %vm51, %v52, %v35
  %v54 = vshrl.u32 %v53, 4
  %v55 = vand.u32 %v53, 15
  %v56 = vsub.s32 0, %v55
  %v57 = vsel %vm51, %v56, %v55
  %vm58 = vcmp.lt.s32.totalorder %v36, 0
  %v59 = vsub.s32 0, %v36
  %v60 = vsel %vm58, %v59, %v36
  %v61 = vshrl.u32 %v60, 4
  %v62 = vand.u32 %v60, 15
  %v63 = vsub.s32 0, %v62
  %v64 = vsel %vm58, %v63, %v62
  %vm65 = vcmp.ne.s32.totalorder %v43, 0
  %vm66 = vcmp.ne.s32.totalorder %v50, 0
  %vm67 = vcmp.ne.s32.totalorder %v57, 0
  %vm68 = vcmp.ne.s32.totalorder %v64, 0
  %vm69 = vcmp.lt.s32.totalorder %v43, 0
  %vm70 = vcmp.lt.s32.totalorder %v50, 0
  %vm71 = vcmp.lt.s32.totalorder %v57, 0
  %vm72 = vcmp.lt.s32.totalorder %v64, 0
  %vm73 = vmand %vm69, %vm65
  %vm74 = vmand %vm70, %vm66
  %vm75 = vmand %vm71, %vm67
  %vm76 = vmand %vm72, %vm68
  %v77 = vadd.s32 %v43, 16
  %v78 = vadd.s32 %v50, 16
  %v79 = vadd.s32 %v57, 16
  %v80 = vadd.s32 %v64, 16
  %v81 = vsel %vm73, %v77, %v43
  %v82 = vsel %vm74, %v78, %v50
  %v83 = vsel %vm75, %v79, %v57
  %v84 = vsel %vm76, %v80, %v64
  %vm85 = vcmp.ge.s32.totalorder %v81, 1
  %vm86 = vcmp.ge.s32.totalorder %v82, 1
  %vm87 = vcmp.ge.s32.totalorder %v83, 1
  %vm88 = vcmp.ge.s32.totalorder %v84, 1
  %v89 = vsel %vm85, 1, 0
  %v90 = vsel %vm86, 1, 0
  %v91 = vsel %vm87, 1, 0
  %v92 = vsel %vm88, 1, 0
  %v93 = vcvt.s32.f32 %v89
  %v94 = vcvt.s32.f32 %v90
  %v95 = vcvt.s32.f32 %v91
  %v96 = vcvt.s32.f32 %v92
  %vm97 = vcmp.le.s32.totalorder %v81, 14
  %vm98 = vcmp.le.s32.totalorder %v82, 14
  %vm99 = vcmp.le.s32.totalorder %v83, 14
  %vm100 = vcmp.le.s32.totalorder %v84, 14
  %v101 = vsel %vm97, 1, 0
  %v102 = vsel %vm98, 1, 0
  %v103 = vsel %vm99, 1, 0
  %v104 = vsel %vm100, 1, 0
  %v105 = vcvt.s32.f32 %v101
  %v106 = vcvt.s32.f32 %v102
  %v107 = vcvt.s32.f32 %v103
  %v108 = vcvt.s32.f32 %v104
  %v109 = vmax.f32 %v23, 0.0
  %v110 = vmax.f32 %v24, 0.0
  %v111 = vmax.f32 %v25, 0.0
  %v112 = vmax.f32 %v26, 0.0
  %v113 = vrot.slane %v109, 7
  %v114 = vrot.slane %v110, 7
  %v115 = vrot.slane %v111, 7
  %v116 = vrot.slane %v112, 7
  %vm117 = vcmp.lt.s32.totalorder %v33, 1
  %v118 = vsel %vm117, %v115, %v116
  %v119 = vsel %vm117, %v114, %v115
  %v120 = vsel %vm117, %v113, %v114
  %v121 = vsel %vm117, %v116, %v113
  %122 = vrot.lane.b32.xlu0 %v121, 8
  %v123 = vpop.permute.xlu0 %122
  %124 = vrot.lane.b32.xlu0 %v120, 8
  %v125 = vpop.permute.xlu0 %124
  %126 = vrot.lane.b32.xlu0 %v119, 8
  %v127 = vpop.permute.xlu0 %126
  %128 = vrot.lane.b32.xlu0 %v118, 8
  %v129 = vpop.permute.xlu0 %128
  %v130 = vperm.slane %v27, 0
  %v131 = vmul.f32 %v123, %v130
  %v132 = vmul.f32 %v125, %v130
  %v133 = vmul.f32 %v127, %v130
  %v134 = vmul.f32 %v129, %v130
  %v135 = vadd.f32 %v131, 0.0
  %v136 = vadd.f32 %v132, 0.0
  %v137 = vadd.f32 %v133, 0.0
  %v138 = vadd.f32 %v134, 0.0
  %v139 = vperm.slane %v27, 1
  %v140 = vmul.f32 %v121, %v139
  %v141 = vmul.f32 %v120, %v139
  %v142 = vmul.f32 %v119, %v139
  %v143 = vmul.f32 %v118, %v139
  %v144 = vadd.f32 %v135, %v140
  %v145 = vadd.f32 %v136, %v141
  %v146 = vadd.f32 %v137, %v142
  %v147 = vadd.f32 %v138, %v143
  %148 = vrot.lane.b32.xlu0 %v121, 120
  %v149 = vpop.permute.xlu0 %148
  %150 = vrot.lane.b32.xlu0 %v120, 120
  %v151 = vpop.permute.xlu0 %150
  %152 = vrot.lane.b32.xlu0 %v119, 120
  %v153 = vpop.permute.xlu0 %152
  %154 = vrot.lane.b32.xlu0 %v118, 120
  %v155 = vpop.permute.xlu0 %154
  %v156 = vperm.slane %v27, 2
  %v157 = vmul.f32 %v149, %v156
  %v158 = vmul.f32 %v151, %v156
  %v159 = vmul.f32 %v153, %v156
  %v160 = vmul.f32 %v155, %v156
  %v161 = vadd.f32 %v144, %v157
  %v162 = vadd.f32 %v145, %v158
  %v163 = vadd.f32 %v146, %v159
  %v164 = vadd.f32 %v147, %v160
  %v165 = vmul.f32 %v161, %v93
  %v166 = vmul.f32 %v162, %v94
  %v167 = vmul.f32 %v163, %v95
  %v168 = vmul.f32 %v164, %v96
  %v169 = vadd.f32 %v165, 0.0
  %v170 = vadd.f32 %v166, 0.0
  %v171 = vadd.f32 %v167, 0.0
  %v172 = vadd.f32 %v168, 0.0
  %173 = vrot.lane.b32.xlu0 %v109, 8
  %v174 = vpop.permute.xlu0 %173
  %175 = vrot.lane.b32.xlu0 %v110, 8
  %v176 = vpop.permute.xlu0 %175
  %177 = vrot.lane.b32.xlu0 %v111, 8
  %v178 = vpop.permute.xlu0 %177
  %179 = vrot.lane.b32.xlu0 %v112, 8
  %v180 = vpop.permute.xlu0 %179
  %v181 = vperm.slane %v27, 3
  %v182 = vmul.f32 %v174, %v181
  %v183 = vmul.f32 %v176, %v181
  %v184 = vmul.f32 %v178, %v181
  %v185 = vmul.f32 %v180, %v181
  %v186 = vadd.f32 %v182, 0.0
  %v187 = vadd.f32 %v183, 0.0
  %v188 = vadd.f32 %v184, 0.0
  %v189 = vadd.f32 %v185, 0.0
  %v190 = vperm.slane %v27, 4
  %v191 = vmul.f32 %v109, %v190
  %v192 = vmul.f32 %v110, %v190
  %v193 = vmul.f32 %v111, %v190
  %v194 = vmul.f32 %v112, %v190
  %v195 = vadd.f32 %v186, %v191
  %v196 = vadd.f32 %v187, %v192
  %v197 = vadd.f32 %v188, %v193
  %v198 = vadd.f32 %v189, %v194
  %199 = vrot.lane.b32.xlu0 %v109, 120
  %v200 = vpop.permute.xlu0 %199
  %201 = vrot.lane.b32.xlu0 %v110, 120
  %v202 = vpop.permute.xlu0 %201
  %203 = vrot.lane.b32.xlu0 %v111, 120
  %v204 = vpop.permute.xlu0 %203
  %205 = vrot.lane.b32.xlu0 %v112, 120
  %v206 = vpop.permute.xlu0 %205
  %v207 = vperm.slane %v27, 5
  %v208 = vmul.f32 %v200, %v207
  %v209 = vmul.f32 %v202, %v207
  %v210 = vmul.f32 %v204, %v207
  %v211 = vmul.f32 %v206, %v207
  %v212 = vadd.f32 %v195, %v208
  %v213 = vadd.f32 %v196, %v209
  %v214 = vadd.f32 %v197, %v210
  %v215 = vadd.f32 %v198, %v211
  %v216 = vadd.f32 %v169, %v212
  %v217 = vadd.f32 %v170, %v213
  %v218 = vadd.f32 %v171, %v214
  %v219 = vadd.f32 %v172, %v215
  %v220 = vrot.slane %v109, 1
  %v221 = vrot.slane %v110, 1
  %v222 = vrot.slane %v111, 1
  %v223 = vrot.slane %v112, 1
  %vm224 = vcmp.lt.s32.totalorder %v33, 7
  %v225 = vsel %vm224, %v222, %v223
  %v226 = vsel %vm224, %v221, %v222
  %v227 = vsel %vm224, %v220, %v221
  %v228 = vsel %vm224, %v223, %v220
  %229 = vrot.lane.b32.xlu0 %v227, 8
  %v230 = vpop.permute.xlu0 %229
  %231 = vrot.lane.b32.xlu0 %v226, 8
  %v232 = vpop.permute.xlu0 %231
  %233 = vrot.lane.b32.xlu0 %v225, 8
  %v234 = vpop.permute.xlu0 %233
  %235 = vrot.lane.b32.xlu0 %v228, 8
  %v236 = vpop.permute.xlu0 %235
  %v237 = vperm.slane %v27, 6
  %v238 = vmul.f32 %v230, %v237
  %v239 = vmul.f32 %v232, %v237
  %v240 = vmul.f32 %v234, %v237
  %v241 = vmul.f32 %v236, %v237
  %v242 = vadd.f32 %v238, 0.0
  %v243 = vadd.f32 %v239, 0.0
  %v244 = vadd.f32 %v240, 0.0
  %v245 = vadd.f32 %v241, 0.0
  %v246 = vperm.slane %v27, 7
  %v247 = vmul.f32 %v227, %v246
  %v248 = vmul.f32 %v226, %v246
  %v249 = vmul.f32 %v225, %v246
  %v250 = vmul.f32 %v228, %v246
  %v251 = vadd.f32 %v242, %v247
  %v252 = vadd.f32 %v243, %v248
  %v253 = vadd.f32 %v244, %v249
  %v254 = vadd.f32 %v245, %v250
  %255 = vrot.lane.b32.xlu0 %v227, 120
  %v256 = vpop.permute.xlu0 %255
  %257 = vrot.lane.b32.xlu0 %v226, 120
  %v258 = vpop.permute.xlu0 %257
  %259 = vrot.lane.b32.xlu0 %v225, 120
  %v260 = vpop.permute.xlu0 %259
  %261 = vrot.lane.b32.xlu0 %v228, 120
  %v262 = vpop.permute.xlu0 %261
  %v263 = vperm.slane %v28, 0
  %v264 = vmul.f32 %v256, %v263
  %v265 = vmul.f32 %v258, %v263
  %v266 = vmul.f32 %v260, %v263
  %v267 = vmul.f32 %v262, %v263
  %v268 = vadd.f32 %v251, %v264
  %v269 = vadd.f32 %v252, %v265
  %v270 = vadd.f32 %v253, %v266
  %v271 = vadd.f32 %v254, %v267
  %v272 = vmul.f32 %v268, %v105
  %v273 = vmul.f32 %v269, %v106
  %v274 = vmul.f32 %v270, %v107
  %v275 = vmul.f32 %v271, %v108
  %v276 = vadd.f32 %v216, %v272
  %v277 = vadd.f32 %v217, %v273
  %v278 = vadd.f32 %v218, %v274
  %v279 = vadd.f32 %v219, %v275
  %v280 = vpack.c.bf16 %v277, %v276
  %v281 = vpack.c.bf16 %v279, %v278
  %v282 = vld [vmem:[%s2] sm:$0xf]
  %v283 = vld [vmem:[%s2 + $0x4] sm:$0xf]
  %v284 = vld [vmem:[%s2 + $0x8] sm:$0xf]
  %v285 = vld [vmem:[%s2 + $0xc] sm:$0xf]
  %v286 = vld [vmem:[%s2 + $0x10] sm:$0xf]
  %v287 = vld [vmem:[%s2 + $0x14] sm:$0xf]
  %v288 = vld [vmem:[%s2 + $0x18] sm:$0xf]
  %v289 = vld [vmem:[%s2 + $0x1c] sm:$0xf]
  %v290 = vld [vmem:[%s2 + $0x20] sm:$0xf]
  %v291 = vld [vmem:[%s2 + $0x24] sm:$0xf]
  %v292 = vld [vmem:[%s2 + $0x28] sm:$0xf]
  %v293 = vld [vmem:[%s2 + $0x2c] sm:$0xf]
  %v294 = vld [vmem:[%s2 + $0x30] sm:$0xf]
  %v295 = vld [vmem:[%s2 + $0x34] sm:$0xf]
  %v296 = vld [vmem:[%s2 + $0x38] sm:$0xf]
  %v297 = vld [vmem:[%s2 + $0x3c] sm:$0xf]
  %v298 = vperm.slane %v31, 0
  %v315 = vunpack.c.l.b16 %v282
  %v316 = vunpack.c.l.b16 %v283
  %v317 = vunpack.c.l.b16 %v284
  %v318 = vunpack.c.l.b16 %v285
  %v319 = vunpack.c.l.b16 %v286
  %v320 = vunpack.c.l.b16 %v287
  %v321 = vunpack.c.l.b16 %v288
  %v322 = vunpack.c.l.b16 %v289
  %v323 = vunpack.c.l.b16 %v290
  %v324 = vunpack.c.l.b16 %v291
  %v325 = vunpack.c.l.b16 %v292
  %v326 = vunpack.c.l.b16 %v293
  %v327 = vunpack.c.l.b16 %v294
  %v328 = vunpack.c.l.b16 %v295
  %v329 = vunpack.c.l.b16 %v296
  %v330 = vunpack.c.l.b16 %v297
  %v331 = vpack.c.b16 %v316, %v315
  %v332 = vpack.c.b16 %v318, %v317
  %v333 = vpack.c.b16 %v320, %v319
  %v334 = vpack.c.b16 %v322, %v321
  %v335 = vpack.c.b16 %v324, %v323
  %v336 = vpack.c.b16 %v326, %v325
  %v337 = vpack.c.b16 %v328, %v327
  %v338 = vpack.c.b16 %v330, %v329
  %347 = vmatpush.bf16.msra.mxu0 %v338
  %348 = vmatpush.bf16.msra.mxu0 %v337
  %349 = vmatpush.bf16.msra.mxu0 %v336
  %350 = vmatpush.bf16.msra.mxu0 %v335
  %351 = vmatpush.bf16.msra.mxu0 %v334
  %352 = vmatpush.bf16.msra.mxu0 %v333
  %353 = vmatpush.bf16.msra.mxu0 %v332
  %354 = vmatpush.bf16.msra.mxu0 %v331
  %355 = vmatmul.bf16.gmra.mxu0 %v280
  %v356 = vpop.f32.mrf.mxu0
  %v357 = vadd.f32 %v298, %v356
  %v358 = vpop.f32.mrf.mxu0
  %v359 = vadd.f32 %v298, %v358
  %360 = vmatmul.bf16.gmra.mxu0 %v281
  %v361 = vpop.f32.mrf.mxu0
  %v362 = vadd.f32 %v298, %v361
  %v363 = vpop.f32.mrf.mxu0
  %v364 = vadd.f32 %v298, %v363
  %365 = vdwg.mxu0
  %v366 = vmax.f32 %v357, 0.0
  %v367 = vmax.f32 %v359, 0.0
  %v368 = vmax.f32 %v362, 0.0
  %v369 = vmax.f32 %v364, 0.0
  %v370 = vrot.slane %v366, 7
  %v371 = vrot.slane %v367, 7
  %v372 = vrot.slane %v368, 7
  %v373 = vrot.slane %v369, 7
  %v374 = vsel %vm117, %v372, %v373
  %v375 = vsel %vm117, %v371, %v372
  %v376 = vsel %vm117, %v370, %v371
  %v377 = vsel %vm117, %v373, %v370
  %378 = vrot.lane.b32.xlu0 %v377, 8
  %v379 = vpop.permute.xlu0 %378
  %380 = vrot.lane.b32.xlu0 %v376, 8
  %v381 = vpop.permute.xlu0 %380
  %382 = vrot.lane.b32.xlu0 %v375, 8
  %v383 = vpop.permute.xlu0 %382
  %384 = vrot.lane.b32.xlu0 %v374, 8
  %v385 = vpop.permute.xlu0 %384
  %v386 = vperm.slane %v29, 0
  %v387 = vmul.f32 %v379, %v386
  %v388 = vmul.f32 %v381, %v386
  %v389 = vmul.f32 %v383, %v386
  %v390 = vmul.f32 %v385, %v386
  %v391 = vadd.f32 %v387, 0.0
  %v392 = vadd.f32 %v388, 0.0
  %v393 = vadd.f32 %v389, 0.0
  %v394 = vadd.f32 %v390, 0.0
  %v395 = vperm.slane %v29, 1
  %v396 = vmul.f32 %v377, %v395
  %v397 = vmul.f32 %v376, %v395
  %v398 = vmul.f32 %v375, %v395
  %v399 = vmul.f32 %v374, %v395
  %v400 = vadd.f32 %v391, %v396
  %v401 = vadd.f32 %v392, %v397
  %v402 = vadd.f32 %v393, %v398
  %v403 = vadd.f32 %v394, %v399
  %404 = vrot.lane.b32.xlu0 %v377, 120
  %v405 = vpop.permute.xlu0 %404
  %406 = vrot.lane.b32.xlu0 %v376, 120
  %v407 = vpop.permute.xlu0 %406
  %408 = vrot.lane.b32.xlu0 %v375, 120
  %v409 = vpop.permute.xlu0 %408
  %410 = vrot.lane.b32.xlu0 %v374, 120
  %v411 = vpop.permute.xlu0 %410
  %v412 = vperm.slane %v29, 2
  %v413 = vmul.f32 %v405, %v412
  %v414 = vmul.f32 %v407, %v412
  %v415 = vmul.f32 %v409, %v412
  %v416 = vmul.f32 %v411, %v412
  %v417 = vadd.f32 %v400, %v413
  %v418 = vadd.f32 %v401, %v414
  %v419 = vadd.f32 %v402, %v415
  %v420 = vadd.f32 %v403, %v416
  %v421 = vmul.f32 %v417, %v93
  %v422 = vmul.f32 %v418, %v94
  %v423 = vmul.f32 %v419, %v95
  %v424 = vmul.f32 %v420, %v96
  %v425 = vadd.f32 %v421, 0.0
  %v426 = vadd.f32 %v422, 0.0
  %v427 = vadd.f32 %v423, 0.0
  %v428 = vadd.f32 %v424, 0.0
  %429 = vrot.lane.b32.xlu0 %v366, 8
  %v430 = vpop.permute.xlu0 %429
  %431 = vrot.lane.b32.xlu0 %v367, 8
  %v432 = vpop.permute.xlu0 %431
  %433 = vrot.lane.b32.xlu0 %v368, 8
  %v434 = vpop.permute.xlu0 %433
  %435 = vrot.lane.b32.xlu0 %v369, 8
  %v436 = vpop.permute.xlu0 %435
  %v437 = vperm.slane %v29, 3
  %v438 = vmul.f32 %v430, %v437
  %v439 = vmul.f32 %v432, %v437
  %v440 = vmul.f32 %v434, %v437
  %v441 = vmul.f32 %v436, %v437
  %v442 = vadd.f32 %v438, 0.0
  %v443 = vadd.f32 %v439, 0.0
  %v444 = vadd.f32 %v440, 0.0
  %v445 = vadd.f32 %v441, 0.0
  %v446 = vperm.slane %v29, 4
  %v447 = vmul.f32 %v366, %v446
  %v448 = vmul.f32 %v367, %v446
  %v449 = vmul.f32 %v368, %v446
  %v450 = vmul.f32 %v369, %v446
  %v451 = vadd.f32 %v442, %v447
  %v452 = vadd.f32 %v443, %v448
  %v453 = vadd.f32 %v444, %v449
  %v454 = vadd.f32 %v445, %v450
  %455 = vrot.lane.b32.xlu0 %v366, 120
  %v456 = vpop.permute.xlu0 %455
  %457 = vrot.lane.b32.xlu0 %v367, 120
  %v458 = vpop.permute.xlu0 %457
  %459 = vrot.lane.b32.xlu0 %v368, 120
  %v460 = vpop.permute.xlu0 %459
  %461 = vrot.lane.b32.xlu0 %v369, 120
  %v462 = vpop.permute.xlu0 %461
  %v463 = vperm.slane %v29, 5
  %v464 = vmul.f32 %v456, %v463
  %v465 = vmul.f32 %v458, %v463
  %v466 = vmul.f32 %v460, %v463
  %v467 = vmul.f32 %v462, %v463
  %v468 = vadd.f32 %v451, %v464
  %v469 = vadd.f32 %v452, %v465
  %v470 = vadd.f32 %v453, %v466
  %v471 = vadd.f32 %v454, %v467
  %v472 = vadd.f32 %v425, %v468
  %v473 = vadd.f32 %v426, %v469
  %v474 = vadd.f32 %v427, %v470
  %v475 = vadd.f32 %v428, %v471
  %v476 = vrot.slane %v366, 1
  %v477 = vrot.slane %v367, 1
  %v478 = vrot.slane %v368, 1
  %v479 = vrot.slane %v369, 1
  %v480 = vsel %vm224, %v478, %v479
  %v481 = vsel %vm224, %v477, %v478
  %v482 = vsel %vm224, %v476, %v477
  %v483 = vsel %vm224, %v479, %v476
  %484 = vrot.lane.b32.xlu0 %v482, 8
  %v485 = vpop.permute.xlu0 %484
  %486 = vrot.lane.b32.xlu0 %v481, 8
  %v487 = vpop.permute.xlu0 %486
  %488 = vrot.lane.b32.xlu0 %v480, 8
  %v489 = vpop.permute.xlu0 %488
  %490 = vrot.lane.b32.xlu0 %v483, 8
  %v491 = vpop.permute.xlu0 %490
  %v492 = vperm.slane %v29, 6
  %v493 = vmul.f32 %v485, %v492
  %v494 = vmul.f32 %v487, %v492
  %v495 = vmul.f32 %v489, %v492
  %v496 = vmul.f32 %v491, %v492
  %v497 = vadd.f32 %v493, 0.0
  %v498 = vadd.f32 %v494, 0.0
  %v499 = vadd.f32 %v495, 0.0
  %v500 = vadd.f32 %v496, 0.0
  %v501 = vperm.slane %v29, 7
  %v502 = vmul.f32 %v482, %v501
  %v503 = vmul.f32 %v481, %v501
  %v504 = vmul.f32 %v480, %v501
  %v505 = vmul.f32 %v483, %v501
  %v506 = vadd.f32 %v497, %v502
  %v507 = vadd.f32 %v498, %v503
  %v508 = vadd.f32 %v499, %v504
  %v509 = vadd.f32 %v500, %v505
  %510 = vrot.lane.b32.xlu0 %v482, 120
  %v511 = vpop.permute.xlu0 %510
  %512 = vrot.lane.b32.xlu0 %v481, 120
  %v513 = vpop.permute.xlu0 %512
  %514 = vrot.lane.b32.xlu0 %v480, 120
  %v515 = vpop.permute.xlu0 %514
  %516 = vrot.lane.b32.xlu0 %v483, 120
  %v517 = vpop.permute.xlu0 %516
  %v518 = vperm.slane %v30, 0
  %v519 = vmul.f32 %v511, %v518
  %v520 = vmul.f32 %v513, %v518
  %v521 = vmul.f32 %v515, %v518
  %v522 = vmul.f32 %v517, %v518
  %v523 = vadd.f32 %v506, %v519
  %v524 = vadd.f32 %v507, %v520
  %v525 = vadd.f32 %v508, %v521
  %v526 = vadd.f32 %v509, %v522
  %v527 = vmul.f32 %v523, %v105
  %v528 = vmul.f32 %v524, %v106
  %v529 = vmul.f32 %v525, %v107
  %v530 = vmul.f32 %v526, %v108
  %v531 = vadd.f32 %v472, %v527
  %v532 = vadd.f32 %v473, %v528
  %v533 = vadd.f32 %v474, %v529
  %v534 = vadd.f32 %v475, %v530
  %v535 = vpack.c.bf16 %v531, %v531
  %v536 = vpack.c.bf16 %v532, %v532
  %v537 = vpack.c.bf16 %v533, %v533
  %v538 = vpack.c.bf16 %v534, %v534
  %v539 = vpack.c.bf16 %v23, %v23
  %v540 = vpack.c.bf16 %v24, %v24
  %v541 = vpack.c.bf16 %v25, %v25
  %v542 = vpack.c.bf16 %v26, %v26
  %v547 = vunpack.c.l.b16 %v535
  %v548 = vunpack.c.l.b16 %v536
  %v549 = vunpack.c.l.b16 %v537
  %v550 = vunpack.c.l.b16 %v538
  %v551 = vpack.c.b16 %v548, %v547
  %v552 = vpack.c.b16 %v550, %v549
  %v559 = vunpack.c.l.b16 %v539
  %v560 = vunpack.c.l.b16 %v540
  %v561 = vunpack.c.l.b16 %v541
  %v562 = vunpack.c.l.b16 %v542
  %v563 = vpack.c.b16 %v560, %v559
  %v564 = vpack.c.b16 %v562, %v561
  %v567 = vld [vmem:[%s4] sm:$0xf]
  %v568 = vld [vmem:[%s4 + $0x4] sm:$0xf]
  %v569 = vld [vmem:[%s4 + $0x8] sm:$0xf]
  %v570 = vld [vmem:[%s4 + $0xc] sm:$0xf]
  %v571 = vld [vmem:[%s4 + $0x10] sm:$0xf]
  %v572 = vld [vmem:[%s4 + $0x14] sm:$0xf]
  %v573 = vld [vmem:[%s4 + $0x18] sm:$0xf]
  %v574 = vld [vmem:[%s4 + $0x1c] sm:$0xf]
  %v575 = vld [vmem:[%s4 + $0x20] sm:$0xf]
  %v576 = vld [vmem:[%s4 + $0x24] sm:$0xf]
  %v577 = vld [vmem:[%s4 + $0x28] sm:$0xf]
  %v578 = vld [vmem:[%s4 + $0x2c] sm:$0xf]
  %v579 = vld [vmem:[%s4 + $0x30] sm:$0xf]
  %v580 = vld [vmem:[%s4 + $0x34] sm:$0xf]
  %v581 = vld [vmem:[%s4 + $0x38] sm:$0xf]
  %v582 = vld [vmem:[%s4 + $0x3c] sm:$0xf]
  %v583 = vld [vmem:[%s4 + $0x40] sm:$0xf]
  %v584 = vld [vmem:[%s4 + $0x44] sm:$0xf]
  %v585 = vld [vmem:[%s4 + $0x48] sm:$0xf]
  %v586 = vld [vmem:[%s4 + $0x4c] sm:$0xf]
  %v587 = vld [vmem:[%s4 + $0x50] sm:$0xf]
  %v588 = vld [vmem:[%s4 + $0x54] sm:$0xf]
  %v589 = vld [vmem:[%s4 + $0x58] sm:$0xf]
  %v590 = vld [vmem:[%s4 + $0x5c] sm:$0xf]
  %v591 = vld [vmem:[%s4 + $0x60] sm:$0xf]
  %v592 = vld [vmem:[%s4 + $0x64] sm:$0xf]
  %v593 = vld [vmem:[%s4 + $0x68] sm:$0xf]
  %v594 = vld [vmem:[%s4 + $0x6c] sm:$0xf]
  %v595 = vld [vmem:[%s4 + $0x70] sm:$0xf]
  %v596 = vld [vmem:[%s4 + $0x74] sm:$0xf]
  %v597 = vld [vmem:[%s4 + $0x78] sm:$0xf]
  %v598 = vld [vmem:[%s4 + $0x7c] sm:$0xf]
  %v599 = vperm.slane %v31, 1
  %v632 = vunpack.c.l.b16 %v567
  %v633 = vunpack.c.l.b16 %v568
  %v634 = vunpack.c.l.b16 %v569
  %v635 = vunpack.c.l.b16 %v570
  %v636 = vunpack.c.l.b16 %v571
  %v637 = vunpack.c.l.b16 %v572
  %v638 = vunpack.c.l.b16 %v573
  %v639 = vunpack.c.l.b16 %v574
  %v640 = vunpack.c.l.b16 %v575
  %v641 = vunpack.c.l.b16 %v576
  %v642 = vunpack.c.l.b16 %v577
  %v643 = vunpack.c.l.b16 %v578
  %v644 = vunpack.c.l.b16 %v579
  %v645 = vunpack.c.l.b16 %v580
  %v646 = vunpack.c.l.b16 %v581
  %v647 = vunpack.c.l.b16 %v582
  %v648 = vunpack.c.l.b16 %v583
  %v649 = vunpack.c.l.b16 %v584
  %v650 = vunpack.c.l.b16 %v585
  %v651 = vunpack.c.l.b16 %v586
  %v652 = vunpack.c.l.b16 %v587
  %v653 = vunpack.c.l.b16 %v588
  %v654 = vunpack.c.l.b16 %v589
  %v655 = vunpack.c.l.b16 %v590
  %v656 = vunpack.c.l.b16 %v591
  %v657 = vunpack.c.l.b16 %v592
  %v658 = vunpack.c.l.b16 %v593
  %v659 = vunpack.c.l.b16 %v594
  %v660 = vunpack.c.l.b16 %v595
  %v661 = vunpack.c.l.b16 %v596
  %v662 = vunpack.c.l.b16 %v597
  %v663 = vunpack.c.l.b16 %v598
  %v664 = vpack.c.b16 %v633, %v632
  %v665 = vpack.c.b16 %v635, %v634
  %v666 = vpack.c.b16 %v637, %v636
  %v667 = vpack.c.b16 %v639, %v638
  %v668 = vpack.c.b16 %v641, %v640
  %v669 = vpack.c.b16 %v643, %v642
  %v670 = vpack.c.b16 %v645, %v644
  %v671 = vpack.c.b16 %v647, %v646
  %v672 = vpack.c.b16 %v649, %v648
  %v673 = vpack.c.b16 %v651, %v650
  %v674 = vpack.c.b16 %v653, %v652
  %v675 = vpack.c.b16 %v655, %v654
  %v676 = vpack.c.b16 %v657, %v656
  %v677 = vpack.c.b16 %v659, %v658
  %v678 = vpack.c.b16 %v661, %v660
  %v679 = vpack.c.b16 %v663, %v662
  %696 = vmatpush.bf16.msra.mxu0 %v671
  %697 = vmatpush.bf16.msra.mxu0 %v670
  %698 = vmatpush.bf16.msra.mxu0 %v669
  %699 = vmatpush.bf16.msra.mxu0 %v668
  %700 = vmatpush.bf16.msra.mxu0 %v667
  %701 = vmatpush.bf16.msra.mxu0 %v666
  %702 = vmatpush.bf16.msra.mxu0 %v665
  %703 = vmatpush.bf16.msra.mxu0 %v664
  %704 = vmatmul.bf16.gmra.mxu0 %v551
  %v705 = vpop.f32.mrf.mxu0
  %v706 = vadd.f32 %v599, %v705
  %v707 = vpop.f32.mrf.mxu0
  %v708 = vadd.f32 %v599, %v707
  %709 = vmatmul.bf16.gmra.mxu0 %v552
  %v710 = vpop.f32.mrf.mxu0
  %v711 = vadd.f32 %v599, %v710
  %v712 = vpop.f32.mrf.mxu0
  %v713 = vadd.f32 %v599, %v712
  %714 = vdwg.mxu0
  %715 = vmatpush.bf16.msra.mxu0 %v679
  %716 = vmatpush.bf16.msra.mxu0 %v678
  %717 = vmatpush.bf16.msra.mxu0 %v677
  %718 = vmatpush.bf16.msra.mxu0 %v676
  %719 = vmatpush.bf16.msra.mxu0 %v675
  %720 = vmatpush.bf16.msra.mxu0 %v674
  %721 = vmatpush.bf16.msra.mxu0 %v673
  %722 = vmatpush.bf16.msra.mxu0 %v672
  %723 = vmatmul.bf16.gmra.mxu0 %v563
  %v724 = vpop.f32.mrf.mxu0
  %v725 = vadd.f32 %v706, %v724
  %v726 = vpop.f32.mrf.mxu0
  %v727 = vadd.f32 %v708, %v726
  %728 = vmatmul.bf16.gmra.mxu0 %v564
  %v729 = vpop.f32.mrf.mxu0
  %v730 = vadd.f32 %v711, %v729
  %v731 = vpop.f32.mrf.mxu0
  %v732 = vadd.f32 %v713, %v731
  %733 = vdwg.mxu0
  %734 = vst [vmem:[%s6] sm:$0xff] %v725
  %735 = vst [vmem:[%s6 + $0x8] sm:$0xff] %v727
  %736 = vst [vmem:[%s6 + $0x10] sm:$0xff] %v730
  %737 = vst [vmem:[%s6 + $0x18] sm:$0xff] %v732
  // Predicated region
  $region26: #{xception_block.1} parent=0 // pred_check
    _
  $region27: #{xception_block.1} parent=0 // pred_check_branch
    %739 = sbr.rel (0) target = $region29
  $region28: #{xception_block.1} parent=0 // pred_region
    _
  $region29: #{xception_block.1} parent=0 // pred_fallthru
    _
  // Predicated region
  $region30: #{xception_block.1} parent=0 // pred_check
    _
  $region31: #{xception_block.1} parent=0 // pred_check_branch
    %741 = sbr.rel (0) target = $region33
  $region32: #{xception_block.1} parent=0 // pred_region
    _
  $region33: #{xception_block.1} parent=0 // pred_fallthru
    _

</llo_original>
